<compile_context>
chip_gen: v5e
topology: v5e:2x2
jax: 0.10.0
libtpu: 0.0.40
codegen_flags: <defaults>
</compile_context>

<pallas_src>
import functools
import math

import jax
import jax.numpy as jnp
from jax import lax
from jax.experimental import pallas as pl
from jax.experimental.pallas import tpu as pltpu


# ---------------------------------------------------------------------------
# helpers
# ---------------------------------------------------------------------------
def _sublane_granule(dtype):
    return {1: 32, 2: 16, 4: 8}.get(jnp.dtype(dtype).itemsize, 8)


def _pick_tile(n, cap, granule):
    """Largest multiple-of-`granule` divisor of n that is <= cap."""
    if n <= cap:
        return n
    t = (cap // granule) * granule
    while t >= granule:
        if n % t == 0:
            return t
        t -= granule
    # TODO(synk): pad + mask ragged sequence lengths instead of full-dim fallback.
    return n


def _vmem_limit(nbytes):
    """Scoped-VMEM limit with headroom, clamped to a v7x-safe ceiling."""
    return int(min(max(2 * nbytes + (4 << 20), 16 << 20), 48 << 20))


# ---------------------------------------------------------------------------
# Kernel 1: QKV projection  qkv[g] = x @ (W[g])^T,  W[0] pre-scaled by 1/sqrt(d)
# ---------------------------------------------------------------------------
def _qkv_projection_kernel(x_ref, w_ref, o_ref, *, mxu_dtype):
    # x_ref: [tm, d_in] (input dtype); w_ref: [tn, d_in] (mxu_dtype, streamed).
    x = x_ref[...].astype(mxu_dtype)                   # feed MXU in bf16
    o_ref[...] = lax.dot_general(
        x, w_ref[...],
        dimension_numbers=(((1,), (1,)), ((), ())),    # x @ W^T, no transpose
        preferred_element_type=jnp.float32).astype(o_ref.dtype)


def _qkv_projection(x, w_qkv, d_out, tm, tn, mxu_dtype):
    S, d_in = x.shape
    mb = jnp.dtype(mxu_dtype).itemsize
    xb = x.dtype.itemsize
    # TODO(synk): for very large d_in add a reduction grid axis with an f32
    # VMEM accumulator instead of keeping d_in resident per tile.
    est = (2 * tm * d_in * xb + 2 * tn * d_in * mb
           + 2 * tm * tn * mb + tm * tn * 4)
    kernel = functools.partial(_qkv_projection_kernel, mxu_dtype=mxu_dtype)
    return pl.pallas_call(
        kernel,
        out_shape=jax.ShapeDtypeStruct((3, S, d_out), mxu_dtype),
        grid_spec=pltpu.PrefetchScalarGridSpec(
            num_scalar_prefetch=0,
            grid=(S // tm, 3, d_out // tn),
            in_specs=[
                pl.BlockSpec((tm, d_in), lambda i, g, n: (i, 0)),
                pl.BlockSpec((None, tn, d_in), lambda i, g, n: (g, n, 0)),
            ],
            out_specs=pl.BlockSpec((None, tm, tn), lambda i, g, n: (g, i, n)),
        ),
        compiler_params=pltpu.CompilerParams(
            dimension_semantics=("parallel", "arbitrary", "arbitrary"),
            vmem_limit_bytes=_vmem_limit(est)),
        cost_estimate=pl.CostEstimate(
            flops=2 * S * d_in * 3 * d_out,
            transcendentals=0,
            bytes_accessed=x.size * xb + w_qkv.size * mb + 3 * S * d_out * mb),
    )(x, w_qkv)


# ---------------------------------------------------------------------------
# Kernel 2a: flash attention, K/V resident in VMEM (small S*d_out)
# ---------------------------------------------------------------------------
def _flash_resident_kernel(q_ref, k_ref, v_ref, o_ref, *, tk, n_chunks):
    # q_ref: [tq, d]; k_ref/v_ref: [S, d] (resident, fetched once per core).
    q = q_ref[...]                                     # bf16, scale folded in
    tq, d = q.shape

    def step(j, carry):
        m_prev, l_prev, acc_prev = carry
        start = pl.multiple_of(j * tk, tk)
        k_blk = k_ref[pl.ds(start, tk), :]
        v_blk = v_ref[pl.ds(start, tk), :]
        s = lax.dot_general(                           # q @ k^T (transposed
            q, k_blk,                                  # contraction, MXU-native)
            dimension_numbers=(((1,), (1,)), ((), ())),
            preferred_element_type=jnp.float32)        # [tq, tk] f32
        m_new = jnp.maximum(m_prev, jnp.max(s, axis=-1, keepdims=True))
        alpha = jnp.exp(m_prev - m_new)
        p = jnp.exp(s - m_new)
        l_new = alpha * l_prev + jnp.sum(p, axis=-1, keepdims=True)
        acc_new = alpha * acc_prev + jnp.dot(
            p.astype(v_blk.dtype), v_blk, preferred_element_type=jnp.float32)
        return m_new, l_new, acc_new

    init = (jnp.full((tq, 1), -jnp.inf, jnp.float32),
            jnp.zeros((tq, 1), jnp.float32),
            jnp.zeros((tq, d), jnp.float32))
    m, l, acc = lax.fori_loop(0, n_chunks, step, init,
                              unroll=True if n_chunks <= 8 else None)
    o_ref[...] = (acc * pl.reciprocal(l, approx=False)).astype(o_ref.dtype)


def _flash_attention_resident(qkv, out_dtype, tq, tk):
    _, S, d_out = qkv.shape
    mb = qkv.dtype.itemsize
    ob = jnp.dtype(out_dtype).itemsize
    n_chunks = S // tk
    est = (2 * tq * d_out * mb + 4 * S * d_out * mb + 2 * tq * d_out * ob
           + 3 * tq * tk * 4 + tq * d_out * 4)
    kernel = functools.partial(_flash_resident_kernel, tk=tk, n_chunks=n_chunks)
    return pl.pallas_call(
        kernel,
        out_shape=jax.ShapeDtypeStruct((S, d_out), out_dtype),
        grid_spec=pltpu.PrefetchScalarGridSpec(
            num_scalar_prefetch=0,
            grid=(S // tq,),
            in_specs=[
                pl.BlockSpec((None, tq, d_out), lambda i: (0, i, 0)),
                pl.BlockSpec((None, S, d_out), lambda i: (1, 0, 0)),  # K resident
                pl.BlockSpec((None, S, d_out), lambda i: (2, 0, 0)),  # V resident
            ],
            out_specs=pl.BlockSpec((tq, d_out), lambda i: (i, 0)),
        ),
        compiler_params=pltpu.CompilerParams(
            dimension_semantics=("parallel",),
            vmem_limit_bytes=_vmem_limit(est)),
        cost_estimate=pl.CostEstimate(
            flops=4 * S * S * d_out,
            transcendentals=S * S,
            bytes_accessed=3 * S * d_out * mb + S * d_out * ob),
    )(qkv, qkv, qkv)


# ---------------------------------------------------------------------------
# Kernel 2b: flash attention, streamed K/V tiles (large S*d_out)
# ---------------------------------------------------------------------------
def _flash_streaming_kernel(q_ref, k_ref, v_ref, o_ref, m_sc, l_sc, acc_sc):
    kv = pl.program_id(1)

    @pl.when(kv == 0)
    def _():
        m_sc[...] = jnp.full_like(m_sc, -jnp.inf)
        l_sc[...] = jnp.zeros_like(l_sc)
        acc_sc[...] = jnp.zeros_like(acc_sc)

    s = lax.dot_general(
        q_ref[...], k_ref[...],
        dimension_numbers=(((1,), (1,)), ((), ())),
        preferred_element_type=jnp.float32)            # [tq, tk]
    m_prev = m_sc[...]
    m_new = jnp.maximum(m_prev, jnp.max(s, axis=-1, keepdims=True))
    alpha = jnp.exp(m_prev - m_new)
    p = jnp.exp(s - m_new)
    l_sc[...] = alpha * l_sc[...] + jnp.sum(p, axis=-1, keepdims=True)
    acc_sc[...] = alpha * acc_sc[...] + jnp.dot(
        p.astype(v_ref.dtype), v_ref[...], preferred_element_type=jnp.float32)
    m_sc[...] = m_new

    @pl.when(kv == pl.num_programs(1) - 1)
    def _():
        inv_l = pl.reciprocal(l_sc[...], approx=False)
        o_ref[...] = (acc_sc[...] * inv_l).astype(o_ref.dtype)


def _flash_attention_streaming(qkv, out_dtype, tq, tk):
    _, S, d_out = qkv.shape
    mb = qkv.dtype.itemsize
    ob = jnp.dtype(out_dtype).itemsize
    est = (2 * tq * d_out * mb + 4 * tk * d_out * mb + 2 * tq * d_out * ob
           + 3 * tq * tk * 4 + tq * d_out * 4)
    return pl.pallas_call(
        _flash_streaming_kernel,
        out_shape=jax.ShapeDtypeStruct((S, d_out), out_dtype),
        grid_spec=pltpu.PrefetchScalarGridSpec(
            num_scalar_prefetch=0,
            grid=(S // tq, S // tk),
            in_specs=[
                pl.BlockSpec((None, tq, d_out), lambda i, j: (0, i, 0)),
                pl.BlockSpec((None, tk, d_out), lambda i, j: (1, j, 0)),
                pl.BlockSpec((None, tk, d_out), lambda i, j: (2, j, 0)),
            ],
            out_specs=pl.BlockSpec((tq, d_out), lambda i, j: (i, 0)),
            scratch_shapes=[
                pltpu.VMEM((tq, 1), jnp.float32),      # running max m
                pltpu.VMEM((tq, 1), jnp.float32),      # running denom l
                pltpu.VMEM((tq, d_out), jnp.float32),  # f32 accumulator
            ],
        ),
        compiler_params=pltpu.CompilerParams(
            dimension_semantics=("parallel", "arbitrary"),
            vmem_limit_bytes=_vmem_limit(est)),
        cost_estimate=pl.CostEstimate(
            flops=4 * S * S * d_out,
            transcendentals=S * S,
            bytes_accessed=(S // tq) * 2 * S * d_out * mb
            + S * d_out * (mb + ob)),
    )(qkv, qkv, qkv)


# ---------------------------------------------------------------------------
# Wrapper
# ---------------------------------------------------------------------------
def self_attention(x, w_query, w_key, w_value, *, q_tile=512, kv_tile=512,
                   mxu_dtype=jnp.bfloat16):
    """x: [S, d_in]; w_*: [d_out, d_in] (PyTorch Linear layout, no bias)."""
    S, d_in = x.shape
    d_out = w_query.shape[0]

    # Stacked fused weight (3, d_out, d_in), softmax scale folded into Wq in
    # f32 before the bf16 cast; streamed tile-by-tile in kernel 1.
    scale = 1.0 / math.sqrt(d_out)
    w_qkv = jnp.stack([
        (w_query.astype(jnp.float32) * scale).astype(mxu_dtype),
        w_key.astype(mxu_dtype),
        w_value.astype(mxu_dtype),
    ], axis=0)

    gran_x = _sublane_granule(x.dtype)
    gran_m = _sublane_granule(mxu_dtype)

    # TODO(synk): pad d_out up to a multiple of 128 (zero-padded weights) for
    # full MXU lane utilization when the head dim is small.
    tm = _pick_tile(S, 512, max(gran_x, gran_m))
    tn = _pick_tile(d_out, 512, 128 if d_out % 128 == 0 else gran_m)
    qkv = _qkv_projection(x, w_qkv, d_out, tm, tn, mxu_dtype)   # (3, S, d_out) bf16

    # Query tiles: keep S//tq >= 2 when possible so both TensorCores get work.
    tq_cap = min(q_tile, max(gran_m, S // 2))
    tq = _pick_tile(S, tq_cap, gran_m)
    tk = _pick_tile(S, kv_tile, gran_m)

    # K+V (double-buffered) VMEM footprint if hoisted resident.
    kv_resident_bytes = 4 * S * d_out * jnp.dtype(mxu_dtype).itemsize
    if kv_resident_bytes <= (8 << 20):
        return _flash_attention_resident(qkv, x.dtype, tq, tk)
    return _flash_attention_streaming(qkv, x.dtype, tq, tk)


def _reference(x, w_query, w_key, w_value):
    """Pure-JAX reference mirroring the (intended) PyTorch forward."""
    q = x @ w_query.T
    k = x @ w_key.T
    v = x @ w_value.T
    scores = q @ k.T / math.sqrt(k.shape[-1])
    weights = jax.nn.softmax(scores, axis=-1)
    return weights @ v


if __name__ == "__main__":
    # Small shapes consistent with the module: seq=8, d_in=32, d_out=32.
    S, d_in, d_out = 8, 32, 32
    key = jax.random.PRNGKey(0)
    kx, kq, kk, kv_ = jax.random.split(key, 4)

    x = jax.random.normal(kx, (S, d_in), dtype=jnp.float32)

    # torch.nn.Linear default init: U(-1/sqrt(d_in), 1/sqrt(d_in)); qkv_bias=False.
    bound = 1.0 / math.sqrt(d_in)
    w_query = jax.random.uniform(kq, (d_out, d_in), jnp.float32, -bound, bound)
    w_key = jax.random.uniform(kk, (d_out, d_in), jnp.float32, -bound, bound)
    w_value = jax.random.uniform(kv_, (d_out, d_in), jnp.float32, -bound, bound)

    out = self_attention(x, w_query, w_key, w_value)
    out = jax.block_until_ready(out)

    ref = _reference(x, w_query, w_key, w_value)
    assert out.shape == (S, d_out)
    # bf16 MXU feeding (inputs/q/k/v rounded to bf16, f32 accumulation) vs the
    # pure-f32 reference: tolerance sized accordingly.
    assert jnp.allclose(out, ref, atol=5e-2, rtol=5e-2), "mismatch vs reference"

    print("KERNEL_OK")
</pallas_src>

<mosaic_0001>
module attributes {stable_mosaic.version = 11 : i64} {
  func.func @_qkv_projection_kernel(%arg0: i32, %arg1: i32, %arg2: i32, %arg3: memref<8x32xf32, #tpu.memory_space<vmem>>, %arg4: memref<1x32x32xbf16, #tpu.memory_space<vmem>>, %arg5: memref<1x8x32xbf16, #tpu.memory_space<vmem>>) attributes {dimension_semantics = [#tpu.dimension_semantics<parallel>, #tpu.dimension_semantics<arbitrary>, #tpu.dimension_semantics<arbitrary>], iteration_bounds = array<i64: 1, 3, 1>, scalar_prefetch = 0 : i64, scratch_operands = 0 : i64, tpu.core_type = #tpu.core_type<tc>, window_params = [{transform_indices = @transform_0, window_bounds = array<i64: 8, 32>}, {transform_indices = @transform_1, window_bounds = array<i64: 1, 32, 32>}, {transform_indices = @transform_2, window_bounds = array<i64: 1, 8, 32>}]} {
    %c0 = arith.constant 0 : index
    %c0_0 = arith.constant 0 : index
    %0 = vector.load %arg3[%c0, %c0_0] : memref<8x32xf32, #tpu.memory_space<vmem>>, vector<8x32xf32>
    %1 = arith.truncf %0 : vector<8x32xf32> to vector<8x32xbf16>
    %c0_1 = arith.constant 0 : index
    %c0_2 = arith.constant 0 : index
    %c0_3 = arith.constant 0 : index
    %2 = vector.load %arg4[%c0_1, %c0_2, %c0_3] : memref<1x32x32xbf16, #tpu.memory_space<vmem>>, vector<1x32x32xbf16>
    %3 = vector.shape_cast %2 : vector<1x32x32xbf16> to vector<32x32xbf16>
    %cst = arith.constant dense<0.000000e+00> : vector<8x32xf32>
    %4 = tpu.matmul %1, %3, %cst {dimension_numbers = #tpu.dot_dimension_numbers<[1], [1], [0], [0], [0, 0, 1, 0], [], []>} : vector<8x32xbf16>, vector<32x32xbf16>, vector<8x32xf32> -> vector<8x32xf32>
    %5 = arith.truncf %4 : vector<8x32xf32> to vector<8x32xbf16>
    %c0_4 = arith.constant 0 : index
    %c0_5 = arith.constant 0 : index
    %c0_6 = arith.constant 0 : index
    %6 = vector.load %arg5[%c0_4, %c0_5, %c0_6] : memref<1x8x32xbf16, #tpu.memory_space<vmem>>, vector<1x8x32xbf16>
    %7 = vector.shape_cast %6 : vector<1x8x32xbf16> to vector<8x32xbf16>
    %8 = vector.shape_cast %5 : vector<8x32xbf16> to vector<1x8x32xbf16>
    tpu.vector_store %arg5[%c0_4, %c0_5, %c0_6], %8 {strides = array<i32>} : memref<1x8x32xbf16, #tpu.memory_space<vmem>>, vector<1x8x32xbf16>,
    return
  }
  func.func @transform_0(%arg0: i32, %arg1: i32, %arg2: i32) -> (i32, i32) {
    %c0_i32 = arith.constant 0 : i32
    %c0_i32_0 = arith.constant 0 : i32
    return %arg0, %c0_i32 : i32, i32
  }
  func.func @transform_1(%arg0: i32, %arg1: i32, %arg2: i32) -> (i32, i32, i32) {
    %c0_i32 = arith.constant 0 : i32
    %c0_i32_0 = arith.constant 0 : i32
    return %arg1, %arg2, %c0_i32 : i32, i32, i32
  }
  func.func @transform_2(%arg0: i32, %arg1: i32, %arg2: i32) -> (i32, i32, i32) {
    %c0_i32 = arith.constant 0 : i32
    return %arg1, %arg0, %arg2 : i32, i32, i32
  }
}

</mosaic_0001>

<llo_original>
// kernel: tpu_custom_call.1
$region0: #{tpu_custom_call.1}
  #allocation0 [shape = 'u32[]', space=smem, size = 0x4, offset = 0x4, fixed_abs, tag = 'smem constant byte address 0x4 - core index']
  #allocation1 [shape = 'u32[72,128]{1,0:T(1,128)}', space=vmem, size = 0x9000, scoped, tag = 'internal scratch']
  %s0 = inlined_call_operand.hbm [shape: f32[8,32], index: 0, kind: input, shape index: {}]
  %s1 = inlined_call_operand.hbm [shape: bf16[3,32,32], index: 1, kind: input, shape index: {}]
  %s2 = inlined_call_operand.hbm [shape: bf16[3,8,32], index: 2, kind: output, shape index: {}]
  %s3 = sld [smem:[#allocation0]]
  $region49: #{tpu_custom_call.1} parent=0
    _
  %s5 = ssub.s32 1, %s3
  %s6 = scalar_select 0, %s5, %s3
  $region1: #{tpu_custom_call.1} parent=0
    #allocation2 [shape = 'u8[4096]{0}', space=vmem, size = 0x1000, scoped, tag = 'input window, operand 0, single buffered']
    #allocation3 [shape = 's32[2]{0}', space=sflag, size = 0x8, scoped, tag = 'scoped memory for tpu_custom_call.1']
    #allocation4 [shape = 's32[2]{0}', space=sflag, size = 0x8, scoped, tag = 'scoped memory for tpu_custom_call.1']
    #allocation5 [shape = 'u8[16384]{0}', space=vmem, size = 0x4000, scoped, tag = 'input window, operand 1']
    #allocation6 [shape = 's32[2]{0}', space=sflag, size = 0x8, scoped, tag = 'scoped memory for tpu_custom_call.1']
    #allocation7 [shape = 'u8[4096]{0}', space=vmem, size = 0x1000, scoped, tag = 'output window, operand 0']
    %7 = vsyncpa [#allocation3], 0
    %8 = vsyncpa [#allocation6], 0
    %s9 = scalar_lea.sflag [#allocation6], 1
    %10 = vsyncpa %s9, 0
    %11 = vsyncpa [#allocation4], 0
    %s12 = scalar_lea.sflag [#allocation4], 1
    %13 = vsyncpa %s12, 0
    loop: start=0, step=1, limit=5
    $region2: #{tpu_custom_call.1} parent=1 // loop_pre_header
      _
    $region3: #{tpu_custom_call.1} parent=1 // loop_header
      %s15 = sphi 0, %s19
      %p16 = scmp.ge.s32.totalorder %s15, 5
      %s22 = sphi 0, %s41
      %s23 = sphi 0, %s37
      %s24 = sphi 0, %s33
      %s25 = sphi 0, %s22
      %s26 = sphi 0, %s23
      %s27 = sphi 0, %s24
      %s28 = sphi 0, %s25
      %s29 = sphi 0, %s26
      %s30 = sphi 0, %s27
      %s44 = sphi 0, %s46
      %s47 = sphi 0, %s44
      %s48 = sphi 0, %s47
      %s64 = sphi 0, %s48
      %s72 = sphi 0, %s74
      %s75 = sphi 0, %s72
      %s76 = sphi 0, %s75
      %s92 = sphi 0, %s76
      %s102 = sphi 0, %s104
      %s105 = sphi 0, %s102
      %s106 = sphi 0, %s105
      %s122 = sphi 0, %s106
    $region4: #{tpu_custom_call.1} parent=1 // loop_header_branch
      %18 = sbr.rel (%p16) target = $region8
    $region5: #{tpu_custom_call.1} parent=1 // loop_body
      %s20 = ssub.s32 %s15, 1
      %s21 = ssub.s32 %s15, 2
      %s31 = sadd.s32 1, %s24
      %p32 = scmp.ge.s32.totalorder %s31, 1
      %s33 = scalar_select %p32, 0, %s31
      %s34 = sadd.s32 1, %s23
      %s35 = scalar_select %p32, %s34, %s23
      %p36 = scmp.ge.s32.totalorder %s35, 3
      %s37 = scalar_select %p36, 0, %s35
      %s38 = sadd.s32 1, %s22
      %s39 = scalar_select %p36, %s38, %s22
      %p40 = scmp.ge.s32.totalorder %s39, 1
      %s41 = scalar_select %p40, 0, %s39
      %s42 = ssub.s32 %s22, %s41
      %p43 = scmp.eq.s32.totalorder %s42, 0
      %s45 = sadd.s32 %s44, 1
      %s46 = scalar_select %p43, %s44, %s45
      %p49 = pneg %p43
      %p50 = scmp.eq.s32.totalorder %s15, 2
      %p51 = por %p49, %p50
      %p52 = scmp.ne.s32.totalorder %s44, %s47
      %p53 = scmp.eq.s32.totalorder %s15, 0
      %p54 = por %p52, %p53
      %p55 = scmp.ne.s32.totalorder %s44, %s47
      %p56 = scmp.eq.s32.totalorder %s20, 2
      %p57 = por %p55, %p56
      %p58 = scmp.ne.s32.totalorder %s47, %s48
      %p59 = scmp.eq.s32.totalorder %s20, 0
      %p60 = por %p58, %p59
      %p61 = scmp.ne.s32.totalorder %s47, %s48
      %p62 = scmp.eq.s32.totalorder %s21, 2
      %p63 = por %p61, %p62
      %p65 = scmp.ne.s32.totalorder %s48, %s64
      %p66 = scmp.eq.s32.totalorder %s21, 0
      %p67 = por %p65, %p66
      %s68 = ssub.s32 %s23, %s37
      %s69 = ssub.s32 %s24, %s33
      %s70 = sor.u32 %s68, %s69
      %p71 = scmp.eq.s32.totalorder %s70, 0
      %s73 = sadd.s32 %s72, 1
      %s74 = scalar_select %p71, %s72, %s73
      %p77 = pneg %p71
      %p78 = scmp.eq.s32.totalorder %s15, 2
      %p79 = por %p77, %p78
      %p80 = scmp.ne.s32.totalorder %s72, %s75
      %p81 = scmp.eq.s32.totalorder %s15, 0
      %p82 = por %p80, %p81
      %p83 = scmp.ne.s32.totalorder %s72, %s75
      %p84 = scmp.eq.s32.totalorder %s20, 2
      %p85 = por %p83, %p84
      %p86 = scmp.ne.s32.totalorder %s75, %s76
      %p87 = scmp.eq.s32.totalorder %s20, 0
      %p88 = por %p86, %p87
      %p89 = scmp.ne.s32.totalorder %s75, %s76
      %p90 = scmp.eq.s32.totalorder %s21, 2
      %p91 = por %p89, %p90
      %p93 = scmp.ne.s32.totalorder %s76, %s92
      %p94 = scmp.eq.s32.totalorder %s21, 0
      %p95 = por %p93, %p94
      %s96 = ssub.s32 %s23, %s37
      %s97 = ssub.s32 %s22, %s41
      %s98 = sor.u32 %s96, %s97
      %s99 = ssub.s32 %s24, %s33
      %s100 = sor.u32 %s98, %s99
      %p101 = scmp.eq.s32.totalorder %s100, 0
      %s103 = sadd.s32 %s102, 1
      %s104 = scalar_select %p101, %s102, %s103
      %p107 = pneg %p101
      %p108 = scmp.eq.s32.totalorder %s15, 2
      %p109 = por %p107, %p108
      %p110 = scmp.ne.s32.totalorder %s102, %s105
      %p111 = scmp.eq.s32.totalorder %s15, 0
      %p112 = por %p110, %p111
      %p113 = scmp.ne.s32.totalorder %s102, %s105
      %p114 = scmp.eq.s32.totalorder %s20, 2
      %p115 = por %p113, %p114
      %p116 = scmp.ne.s32.totalorder %s105, %s106
      %p117 = scmp.eq.s32.totalorder %s20, 0
      %p118 = por %p116, %p117
      %p119 = scmp.ne.s32.totalorder %s105, %s106
      %p120 = scmp.eq.s32.totalorder %s21, 2
      %p121 = por %p119, %p120
      %p123 = scmp.ne.s32.totalorder %s106, %s122
      %p124 = scmp.eq.s32.totalorder %s21, 0
      %p125 = por %p123, %p124
      %p126 = scmp.le.s32.totalorder 1, %s15
      %p127 = scmp.lt.s32.totalorder %s15, 4
      %p128 = pnand %p126, %p127
      %p129 = pneg %p128
      // Predicated region
      $region9: #{tpu_custom_call.1} parent=5 // pred_check
        _
      $region10: #{tpu_custom_call.1} parent=5 // pred_check_branch
        %131 = sbr.rel (%p128) target = $region12
      $region11: #{tpu_custom_call.1} parent=5 // pred_region
        %s132 = ssub.s32 %s15, 1
        // Predicated region
        $region13: #{tpu_custom_call.1} parent=11 // pred_check
          %p133 = pneg %p60
        $region14: #{tpu_custom_call.1} parent=11 // pred_check_branch
          %135 = sbr.rel (%p133) target = $region16
        $region15: #{tpu_custom_call.1} parent=11 // pred_region
          %137 = vsyncadd [#allocation3], 0
          %s138 = smul.addr %s25, 8
          %s139 = scalar_lea.hbm %s0, %s138
          %s141 = sshll.u32 %s139, 4
          %s142 = int_to_ptr.hbm [resolvable:$true] %s141
          %s143 = sshll.u32 [#allocation2], 4
          %s144 = int_to_ptr.vmem [resolvable:$true] %s143
          %146 = dma.hbm_to_vmem [thread:$0]  %s142, 128, %s144, [#allocation3]
        $region16: #{tpu_custom_call.1} parent=11 // pred_fallthru
          _
      $region12: #{tpu_custom_call.1} parent=5 // pred_fallthru
        _
      %p147 = scmp.lt.s32.totalorder %s15, 3
      // Predicated region
      $region17: #{tpu_custom_call.1} parent=5 // pred_check
        %p148 = pneg %p147
      $region18: #{tpu_custom_call.1} parent=5 // pred_check_branch
        %150 = sbr.rel (%p148) target = $region20
      $region19: #{tpu_custom_call.1} parent=5 // pred_region
        // Predicated region
        $region21: #{tpu_custom_call.1} parent=19 // pred_check
          %p151 = pneg %p82
        $region22: #{tpu_custom_call.1} parent=19 // pred_check_branch
          %153 = sbr.rel (%p151) target = $region24
        $region23: #{tpu_custom_call.1} parent=19 // pred_region
          %s154 = sand.u32 %s72, 1
          %s155 = scalar_lea.sflag [#allocation6], %s154
          %s156 = sand.u32 %s72, 1
          %s157 = smul.addr %s156, 16
          %s158 = scalar_lea.vmem [#allocation5], %s157
          %s159 = smul.u32 4, %s24
          %161 = vsyncadd %s155, 0
          %s162 = smul.addr %s23, 4
          %s163 = sadd.s32 %s159, %s162
          %s164 = smul.addr %s163, 4
          %s165 = scalar_lea.hbm %s1, %s164
          %s166 = sshll.u32 %s165, 4
          %s167 = int_to_ptr.hbm [resolvable:$true] %s166
          %s168 = sshll.u32 %s158, 4
          %s169 = int_to_ptr.vmem [resolvable:$true] %s168
          %174 = dma.hbm_to_vmem [thread:$0]  %s167, 256, %s169, %s155, 64, 64, 4
        $region24: #{tpu_custom_call.1} parent=19 // pred_fallthru
          _
      $region20: #{tpu_custom_call.1} parent=5 // pred_fallthru
        _
      %p175 = scmp.le.s32.totalorder 1, %s15
      %p176 = scmp.lt.s32.totalorder %s15, 4
      %p177 = pnand %p175, %p176
      %p178 = pneg %p177
      // Predicated region
      $region25: #{tpu_custom_call.1} parent=5 // pred_check
        _
      $region26: #{tpu_custom_call.1} parent=5 // pred_check_branch
        %180 = sbr.rel (%p177) target = $region28
      $region27: #{tpu_custom_call.1} parent=5 // pred_region
        %s181 = ssub.s32 %s15, 1
        // Predicated region
        $region29: #{tpu_custom_call.1} parent=27 // pred_check
          %p182 = pneg %p60
        $region30: #{tpu_custom_call.1} parent=27 // pred_check_branch
          %184 = sbr.rel (%p182) target = $region32
        $region31: #{tpu_custom_call.1} parent=27 // pred_region
          %186 = dma.done [#allocation3], 128
        $region32: #{tpu_custom_call.1} parent=27 // pred_fallthru
          _
        %s187 = sand.u32 %s75, 1
        %s188 = scalar_lea.sflag [#allocation6], %s187
        %s189 = sand.u32 %s75, 1
        %s190 = smul.addr %s189, 16
        %s191 = scalar_lea.vmem [#allocation5], %s190
        // Predicated region
        $region33: #{tpu_custom_call.1} parent=27 // pred_check
          %p192 = pneg %p88
        $region34: #{tpu_custom_call.1} parent=27 // pred_check_branch
          %194 = sbr.rel (%p192) target = $region36
        $region35: #{tpu_custom_call.1} parent=27 // pred_region
          %196 = dma.done %s188, 256
        $region36: #{tpu_custom_call.1} parent=27 // pred_fallthru
          _
        %p197 = pneg %p60
        %p198 = pneg %p57
        %s199 = sand.u32 %s75, 1
        %s200 = scalar_lea.sflag [#allocation6], %s199
        %s201 = sand.u32 %s75, 1
        %s202 = smul.addr %s201, 16
        %s203 = scalar_lea.vmem [#allocation5], %s202
        %p204 = pneg %p88
        %p205 = pneg %p85
        %p206 = pneg %p118
        %p207 = pneg %p115
        %s208 = sand.u32 %s105, 1
        %s209 = scalar_lea.sflag [#allocation4], %s208
        %s210 = sand.u32 %s105, 1
        %s211 = smul.addr %s210, 4
        %s212 = scalar_lea.vmem [#allocation7], %s211
        %s213 = smul.u32 4, %s27
        %v215 = vld [vmem:[#allocation2] sm:$0xff]
        %v216 = vpack.c.bf16 %v215, %v215
        %v217 = vld [vmem:[%s191] sm:$0xf]
        %v218 = vld [vmem:[%s191 + $0x4] sm:$0xf]
        %v219 = vld [vmem:[%s191 + $0x8] sm:$0xf]
        %v220 = vld [vmem:[%s191 + $0xc] sm:$0xf]
        %v225 = vunpack.c.l.b16 %v217
        %v226 = vunpack.c.l.b16 %v218
        %v227 = vunpack.c.l.b16 %v219
        %v228 = vunpack.c.l.b16 %v220
        %v229 = vpack.c.b16 %v226, %v225
        %v230 = vpack.c.b16 %v228, %v227
        %vm231 = vcmask 261120
        %v233 = vsel %vm231, %v216, 0
        %v236 = vsel %vm231, %v229, 0
        %v239 = vsel %vm231, %v230, 0
        %241 = vmatpush.bf16.xpose.msra.mxu0 0
        %242 = vmatpush.bf16.xpose.msra.mxu0 0
        %243 = vmatpush.bf16.xpose.msra.mxu0 0
        %244 = vmatpush.bf16.xpose.msra.mxu0 0
        %245 = vmatpush.bf16.xpose.msra.mxu0 0
        %246 = vmatpush.bf16.xpose.msra.mxu0 0
        %247 = vmatpush.bf16.xpose.msra.mxu0 %v239
        %248 = vmatpush.bf16.xpose.msra.mxu0 %v236
        %249 = vmatmul.bf16.gmra.mxu0 %v233
        %v250 = vpop.f32.mrf.mxu0
        %v251 = vadd.f32 0.0, %v250
        %v252 = vpop.f32.mrf.mxu0
        %253 = vdwg.mxu0
        %v254 = vpack.c.bf16 %v251, %v251
        %vm255 = vcmask 257024
        %256 = vst.msk [vmem:[%s212] sm:$0xf] %vm255, %v254
        %s257 = sand.u32 %s105, 1
        %s258 = scalar_lea.sflag [#allocation4], %s257
        %s259 = sand.u32 %s105, 1
        %s260 = smul.addr %s259, 4
        %s261 = scalar_lea.vmem [#allocation7], %s260
        // Predicated region
        $region37: #{tpu_custom_call.1} parent=27 // pred_check
          %p262 = pneg %p115
        $region38: #{tpu_custom_call.1} parent=27 // pred_check_branch
          %264 = sbr.rel (%p262) target = $region40
        $region39: #{tpu_custom_call.1} parent=27 // pred_region
          %266 = vsyncadd %s258, 0
          %s267 = sadd.s32 %s27, %s25
          %s268 = sadd.s32 %s267, %s26
          %s269 = smul.addr %s268, 4
          %s270 = scalar_lea.hbm %s2, %s269
          %s272 = sshll.u32 %s261, 4
          %s273 = int_to_ptr.vmem [resolvable:$true] %s272
          %s274 = sshll.u32 %s270, 4
          %s275 = int_to_ptr.hbm [resolvable:$true] %s274
          %277 = dma.vmem_to_hbm [thread:$0]  %s273, 64, %s275, %s258
        $region40: #{tpu_custom_call.1} parent=27 // pred_fallthru
          _
      $region28: #{tpu_custom_call.1} parent=5 // pred_fallthru
        _
      %p278 = scmp.le.s32.totalorder 2, %s15
      // Predicated region
      $region41: #{tpu_custom_call.1} parent=5 // pred_check
        %p279 = pneg %p278
      $region42: #{tpu_custom_call.1} parent=5 // pred_check_branch
        %281 = sbr.rel (%p279) target = $region44
      $region43: #{tpu_custom_call.1} parent=5 // pred_region
        %s282 = ssub.s32 %s15, 2
        // Predicated region
        $region45: #{tpu_custom_call.1} parent=43 // pred_check
          %p283 = pneg %p121
        $region46: #{tpu_custom_call.1} parent=43 // pred_check_branch
          %285 = sbr.rel (%p283) target = $region48
        $region47: #{tpu_custom_call.1} parent=43 // pred_region
          %s286 = sand.u32 %s106, 1
          %s287 = scalar_lea.sflag [#allocation4], %s286
          %s288 = sand.u32 %s106, 1
          %s289 = smul.addr %s288, 4
          %s290 = scalar_lea.vmem [#allocation7], %s289
          %292 = dma.done %s287, 64
        $region48: #{tpu_custom_call.1} parent=43 // pred_fallthru
          _
      $region44: #{tpu_custom_call.1} parent=5 // pred_fallthru
        _
    $region6: #{tpu_custom_call.1} parent=1 // loop_footer
      %s19 = sadd.s32 1, %s15
    $region7: #{tpu_custom_call.1} parent=1 // loop_footer_branch
      %14 = sbr.rel target = $region3
    $region8: #{tpu_custom_call.1} parent=1 // loop_exit
      _
    %293 = vsyncpa [#allocation3], 1
    %s294 = scalar_lea.sflag [#allocation3], 1
    %295 = vsyncpa %s294, 1
    %296 = vsyncpa [#allocation6], 1
    %s297 = scalar_lea.sflag [#allocation6], 1
    %298 = vsyncpa %s297, 1
    %299 = vsyncpa [#allocation4], 1
    %s300 = scalar_lea.sflag [#allocation4], 1
    %301 = vsyncpa %s300, 1

</llo_original>
